<compile_context>
chip_gen: v7x
topology: tpu7x:2x2x1
jax: 0.10.0
libtpu: 0.0.40
codegen_flags: <defaults>
</compile_context>

<pallas_src>
import functools

import jax
import jax.numpy as jnp
from jax import lax
from jax.experimental import pallas as pl
from jax.experimental.pallas import tpu as pltpu

LANE = 128


def _round_up(x, m):
    return ((x + m - 1) // m) * m


def _pad2(m, rows, cols):
    r, c = m.shape
    return jnp.pad(m, ((0, rows - r), (0, cols - c)))


def _select_budgets():
    """Generation-aware (tile_target, scoped-VMEM limit)."""
    tile, vmem = 512, 32 * 1024 * 1024              # safe everywhere (incl. v7x 64 MiB VMEM)
    try:
        cap = int(getattr(pltpu.get_tpu_info(), "vmem_capacity_bytes", 0))
        if cap > 64 * 1024 * 1024:                  # v5e / v6e: 128 MiB physical VMEM
            tile, vmem = 1024, 64 * 1024 * 1024
    except Exception:
        pass
    return tile, vmem


# ----------------------------------------------------------------------------
# Kernels
# ----------------------------------------------------------------------------
def transform_kernel(x_ref, w_ref, o_ref):
    """One node-row tile of X @ W1 (bf16 in, f32 accumulate, bf16 out)."""
    o_ref[...] = jnp.dot(
        x_ref[...], w_ref[...], preferred_element_type=jnp.float32
    ).astype(o_ref.dtype)


def agg_relu_matmul_kernel(a_ref, m_ref, b1_ref, w2_ref, o_ref, acc_ref):
    """Fused layer-1 aggregate + layer-2 transform.

    Accumulates A_hat[i,k] @ (X W1)[k] into an f32 VMEM scratch; on the last
    reduction step applies bias + ReLU and immediately multiplies by the
    VMEM-resident W2, writing H @ W2 without materializing H in HBM.
    """
    k = pl.program_id(1)

    @pl.when(k == 0)
    def _():
        acc_ref[...] = jnp.zeros_like(acc_ref)

    acc_ref[...] += jnp.dot(
        a_ref[...], m_ref[...], preferred_element_type=jnp.float32
    )

    @pl.when(k == pl.num_programs(1) - 1)
    def _():
        h = jnp.maximum(acc_ref[...] + b1_ref[...], 0.0)
        # TODO(synk): training-mode dropout (scaled Bernoulli via pltpu PRNG) would be
        # applied to `h` here; the reference module runs in eval mode -> identity.
        o_ref[...] = jnp.dot(
            h.astype(w2_ref.dtype), w2_ref[...], preferred_element_type=jnp.float32
        ).astype(o_ref.dtype)


def agg_log_softmax_kernel(a_ref, m_ref, b2_ref, o_ref, *, num_valid):
    """Layer-2 aggregate + masked log_softmax, accumulating directly into o_ref (f32).

    The output block index is fixed across the reduction axis, so o_ref stays
    resident in VMEM and acts as the accumulator (no scratch needed).
    """
    k = pl.program_id(1)

    @pl.when(k == 0)
    def _():
        o_ref[...] = jnp.zeros_like(o_ref)

    o_ref[...] += jnp.dot(
        a_ref[...], m_ref[...], preferred_element_type=jnp.float32
    )

    @pl.when(k == pl.num_programs(1) - 1)
    def _():
        z = o_ref[...] + b2_ref[...]
        lane = lax.broadcasted_iota(jnp.int32, z.shape, dimension=1)
        zm = jnp.where(lane < num_valid, z, -1e30)   # mask padded class lanes
        row_max = jnp.max(zm, axis=1, keepdims=True)
        lse = row_max + jnp.log(
            jnp.sum(jnp.exp(zm - row_max), axis=1, keepdims=True)
        )
        o_ref[...] = zm - lse


# ----------------------------------------------------------------------------
# pallas_call wrappers
# ----------------------------------------------------------------------------
def _transform(x, w, tm, vmem_limit):
    n_pad, f_pad = x.shape
    d_pad = w.shape[1]
    flops = 2 * n_pad * f_pad * d_pad
    bytes_accessed = (
        x.size * x.dtype.itemsize + w.size * w.dtype.itemsize + n_pad * d_pad * 2
    )
    return pl.pallas_call(
        transform_kernel,
        out_shape=jax.ShapeDtypeStruct((n_pad, d_pad), jnp.bfloat16),
        grid_spec=pltpu.PrefetchScalarGridSpec(
            num_scalar_prefetch=0,
            grid=(n_pad // tm,),
            in_specs=[
                pl.BlockSpec((tm, f_pad), lambda i: (i, 0)),
                pl.BlockSpec((f_pad, d_pad), lambda i: (0, 0)),
            ],
            out_specs=pl.BlockSpec((tm, d_pad), lambda i: (i, 0)),
        ),
        compiler_params=pltpu.CompilerParams(
            dimension_semantics=("parallel",),
            vmem_limit_bytes=vmem_limit,
        ),
        cost_estimate=pl.CostEstimate(
            flops=flops, transcendentals=0, bytes_accessed=bytes_accessed
        ),
    )(x, w)


def _aggregate_relu_transform(a, m, b1, w2, tm, tk, vmem_limit):
    """relu(A_hat @ M + b1) @ W2, tiled over (row, reduction)."""
    n_pad = a.shape[0]
    h_pad = m.shape[1]
    c_pad = w2.shape[1]
    n_row = n_pad // tm
    flops = 2 * n_pad * n_pad * h_pad + 2 * n_pad * h_pad * c_pad
    bytes_accessed = (
        a.size * a.dtype.itemsize
        + m.size * m.dtype.itemsize * n_row        # M re-read once per row tile
        + b1.size * b1.dtype.itemsize
        + w2.size * w2.dtype.itemsize
        + n_pad * c_pad * 2
    )
    return pl.pallas_call(
        agg_relu_matmul_kernel,
        out_shape=jax.ShapeDtypeStruct((n_pad, c_pad), jnp.bfloat16),
        grid_spec=pltpu.PrefetchScalarGridSpec(
            num_scalar_prefetch=0,
            grid=(n_row, n_pad // tk),             # rows parallel, reduction last
            in_specs=[
                pl.BlockSpec((tm, tk), lambda i, k: (i, k)),      # A_hat tile
                pl.BlockSpec((tk, h_pad), lambda i, k: (k, 0)),   # X @ W1 tile
                pl.BlockSpec((1, h_pad), lambda i, k: (0, 0)),    # b1 (resident)
                pl.BlockSpec((h_pad, c_pad), lambda i, k: (0, 0)),  # W2 (resident)
            ],
            out_specs=pl.BlockSpec((tm, c_pad), lambda i, k: (i, 0)),
            scratch_shapes=[pltpu.VMEM((tm, h_pad), jnp.float32)],
        ),
        compiler_params=pltpu.CompilerParams(
            dimension_semantics=("parallel", "arbitrary"),
            vmem_limit_bytes=vmem_limit,
        ),
        cost_estimate=pl.CostEstimate(
            flops=flops, transcendentals=0, bytes_accessed=bytes_accessed
        ),
    )(a, m, b1, w2)


def _aggregate_log_softmax(a, m, b2, tm, tk, num_valid, vmem_limit):
    """log_softmax(A_hat @ M + b2) over the first `num_valid` class lanes."""
    n_pad = a.shape[0]
    c_pad = m.shape[1]
    n_row = n_pad // tm
    kernel = functools.partial(agg_log_softmax_kernel, num_valid=num_valid)
    flops = 2 * n_pad * n_pad * c_pad
    bytes_accessed = (
        a.size * a.dtype.itemsize
        + m.size * m.dtype.itemsize * n_row        # M re-read once per row tile
        + b2.size * b2.dtype.itemsize
        + n_pad * c_pad * 4
    )
    return pl.pallas_call(
        kernel,
        out_shape=jax.ShapeDtypeStruct((n_pad, c_pad), jnp.float32),
        grid_spec=pltpu.PrefetchScalarGridSpec(
            num_scalar_prefetch=0,
            grid=(n_row, n_pad // tk),
            in_specs=[
                pl.BlockSpec((tm, tk), lambda i, k: (i, k)),      # A_hat tile
                pl.BlockSpec((tk, c_pad), lambda i, k: (k, 0)),   # H @ W2 tile
                pl.BlockSpec((1, c_pad), lambda i, k: (0, 0)),    # b2 (resident)
            ],
            out_specs=pl.BlockSpec((tm, c_pad), lambda i, k: (i, 0)),
        ),
        compiler_params=pltpu.CompilerParams(
            dimension_semantics=("parallel", "arbitrary"),
            vmem_limit_bytes=vmem_limit,
        ),
        cost_estimate=pl.CostEstimate(
            flops=flops, transcendentals=n_pad * c_pad, bytes_accessed=bytes_accessed
        ),
    )(a, m, b2)


# ----------------------------------------------------------------------------
# One-time preparation (padding / casts hoisted out of the per-call forward)
# ----------------------------------------------------------------------------
def prepare_gcn_params(a_hat, x, w1, b1, w2, b2):
    tile_target, vmem_limit = _select_budgets()

    n, f_in = x.shape
    hidden = w1.shape[1]
    n_cls = w2.shape[1]

    n128 = _round_up(n, LANE)
    t = min(tile_target, n128)
    n_pad = _round_up(n, t)

    tm, tk = t, t
    # Keep >=2 row tiles when possible so the parallel row axis feeds both
    # v7x TensorCores (harmless elsewhere).
    if n_pad // tm < 2 and (n_pad // 2) % 8 == 0:
        tm = n_pad // 2

    f_pad = _round_up(f_in, LANE)
    h_pad = _round_up(hidden, LANE)
    c_pad = _round_up(n_cls, LANE)

    params = dict(
        a_p=_pad2(a_hat.astype(jnp.float32), n_pad, n_pad).astype(jnp.bfloat16),
        x_p=_pad2(x.astype(jnp.float32), n_pad, f_pad).astype(jnp.bfloat16),
        w1_p=_pad2(w1.astype(jnp.float32), f_pad, h_pad).astype(jnp.bfloat16),
        w2_p=_pad2(w2.astype(jnp.float32), h_pad, c_pad).astype(jnp.bfloat16),
        b1_p=_pad2(b1.reshape(1, -1).astype(jnp.float32), 1, h_pad),
        b2_p=_pad2(b2.reshape(1, -1).astype(jnp.float32), 1, c_pad),
    )
    meta = dict(n=n, n_cls=n_cls, tm=tm, tk=tk, vmem_limit=vmem_limit)
    return params, meta


def gcn_net_forward(params, meta):
    """relu(A(XW1)+b1) -> dropout(eval, identity) -> A(HW2)+b2 -> log_softmax."""
    tm, tk, vmem = meta["tm"], meta["tk"], meta["vmem_limit"]

    # Layer 1 transform: X @ W1                              [n_pad, h_pad] bf16
    xw1 = _transform(params["x_p"], params["w1_p"], tm, vmem)

    # Fused: relu(A_hat @ XW1 + b1) @ W2  (H never hits HBM) [n_pad, c_pad] bf16
    hw2 = _aggregate_relu_transform(
        params["a_p"], xw1, params["b1_p"], params["w2_p"], tm, tk, vmem
    )

    # Layer 2 aggregate + masked log_softmax                 [n_pad, c_pad] f32
    z = _aggregate_log_softmax(
        params["a_p"], hw2, params["b2_p"], tm, tk, meta["n_cls"], vmem
    )
    return z[: meta["n"], : meta["n_cls"]]


# ----------------------------------------------------------------------------
# Graph normalization (plain-JAX glue) and reference
# ----------------------------------------------------------------------------
def gcn_norm_dense(edge_index, num_nodes):
    """Dense D^-1/2 (A + I) D^-1/2 matching PyG GCNConv's gcn_norm (dedup'd edges)."""
    src, dst = edge_index[0], edge_index[1]
    m = jnp.zeros((num_nodes, num_nodes), jnp.float32).at[dst, src].set(1.0)
    m = jnp.maximum(m, jnp.eye(num_nodes, dtype=jnp.float32))   # self-loops, dedup
    deg = jnp.sum(m, axis=1)
    dinv = 1.0 / jnp.sqrt(deg)
    return dinv[:, None] * m * dinv[None, :]


def gcn_net_reference(a_hat, x, w1, b1, w2, b2):
    h = jnp.maximum(a_hat @ (x @ w1) + b1, 0.0)
    z = a_hat @ (h @ w2) + b2
    return jax.nn.log_softmax(z, axis=1)


if __name__ == "__main__":
    # Small synthetic "Cora-like" problem (deterministic).
    N = 16            # number of nodes
    F_IN = 32         # node feature dim  (stand-in for dataset.num_node_features)
    HIDDEN = 16       # GCNConv hidden size (as in the module)
    NUM_CLASSES = 8   # stand-in for dataset.num_classes

    key = jax.random.PRNGKey(0)
    kx, kw1, kw2 = jax.random.split(key, 3)

    # Ring graph, edges in both directions (src row 0, dst row 1).
    idx = jnp.arange(N)
    src = jnp.concatenate([idx, (idx + 1) % N])
    dst = jnp.concatenate([(idx + 1) % N, idx])
    edge_index = jnp.stack([src, dst]).astype(jnp.int32)   # [2, 2N]

    x = jax.random.normal(kx, (N, F_IN), dtype=jnp.float32)
    w1 = jax.random.normal(kw1, (F_IN, HIDDEN), dtype=jnp.float32) * (1.0 / jnp.sqrt(F_IN))
    b1 = jnp.zeros((1, HIDDEN), dtype=jnp.float32)
    w2 = jax.random.normal(kw2, (HIDDEN, NUM_CLASSES), dtype=jnp.float32) * (1.0 / jnp.sqrt(HIDDEN))
    b2 = jnp.zeros((1, NUM_CLASSES), dtype=jnp.float32)

    a_hat = gcn_norm_dense(edge_index, N)                   # [N, N]

    # Prepare (pad + cast) ONCE; forward can be called repeatedly on prepared params.
    params, meta = prepare_gcn_params(a_hat, x, w1, b1, w2, b2)
    out = gcn_net_forward(params, meta)                     # [N, NUM_CLASSES]
    out = jax.block_until_ready(out)

    # sanity: shape, rows of log_softmax exp-sum to 1, and loose match vs f32 reference
    ref = gcn_net_reference(a_hat, x, w1, b1, w2, b2)
    assert out.shape == (N, NUM_CLASSES)
    assert jnp.allclose(jnp.sum(jnp.exp(out), axis=1), 1.0, atol=1e-4)
    assert float(jnp.max(jnp.abs(out - ref))) < 0.2   # bf16-input drift tolerance

    print("KERNEL_OK")
</pallas_src>

<mosaic_0001>
module attributes {stable_mosaic.version = 11 : i64} {
  func.func @transform_kernel(%arg0: i32, %arg1: memref<64x128xbf16, #tpu.memory_space<vmem>>, %arg2: memref<128x128xbf16, #tpu.memory_space<vmem>>, %arg3: memref<64x128xbf16, #tpu.memory_space<vmem>>) attributes {dimension_semantics = [#tpu.dimension_semantics<parallel>], iteration_bounds = array<i64: 2>, scalar_prefetch = 0 : i64, scratch_operands = 0 : i64, tpu.core_type = #tpu.core_type<tc>, window_params = [{transform_indices = @transform_0, window_bounds = array<i64: 64, 128>}, {pipeline_mode = #tpu.pipeline_mode<synchronous>, transform_indices = @transform_1, window_bounds = array<i64: 128, 128>}, {transform_indices = @transform_2, window_bounds = array<i64: 64, 128>}]} {
    %c0 = arith.constant 0 : index
    %c0_0 = arith.constant 0 : index
    %0 = vector.load %arg1[%c0, %c0_0] : memref<64x128xbf16, #tpu.memory_space<vmem>>, vector<64x128xbf16>
    %c0_1 = arith.constant 0 : index
    %c0_2 = arith.constant 0 : index
    %1 = vector.load %arg2[%c0_1, %c0_2] : memref<128x128xbf16, #tpu.memory_space<vmem>>, vector<128x128xbf16>
    %cst = arith.constant dense<0.000000e+00> : vector<64x128xf32>
    %2 = tpu.matmul %0, %1, %cst {dimension_numbers = #tpu.dot_dimension_numbers<[1], [0], [0], [1], [0, 0, 1, 1], [], []>} : vector<64x128xbf16>, vector<128x128xbf16>, vector<64x128xf32> -> vector<64x128xf32>
    %3 = arith.truncf %2 : vector<64x128xf32> to vector<64x128xbf16>
    %c0_3 = arith.constant 0 : index
    %c0_4 = arith.constant 0 : index
    %4 = vector.load %arg3[%c0_3, %c0_4] : memref<64x128xbf16, #tpu.memory_space<vmem>>, vector<64x128xbf16>
    tpu.vector_store %arg3[%c0_3, %c0_4], %3 {strides = array<i32>} : memref<64x128xbf16, #tpu.memory_space<vmem>>, vector<64x128xbf16>,
    return
  }
  func.func @transform_0(%arg0: i32) -> (i32, i32) {
    %c0_i32 = arith.constant 0 : i32
    %c0_i32_0 = arith.constant 0 : i32
    return %arg0, %c0_i32 : i32, i32
  }
  func.func @transform_1(%arg0: i32) -> (i32, i32) {
    %c0_i32 = arith.constant 0 : i32
    %c0_i32_0 = arith.constant 0 : i32
    %c0_i32_1 = arith.constant 0 : i32
    return %c0_i32, %c0_i32_0 : i32, i32
  }
  func.func @transform_2(%arg0: i32) -> (i32, i32) {
    %c0_i32 = arith.constant 0 : i32
    %c0_i32_0 = arith.constant 0 : i32
    return %arg0, %c0_i32 : i32, i32
  }
}

</mosaic_0001>

<llo_original>
// kernel: tpu_custom_call.1
$region0: #{tpu_custom_call.1}
  #allocation0 [shape = 'u32[]', space=smem, size = 0x4, offset = 0x4, fixed_abs, tag = 'smem constant byte address 0x4 - core index']
  #allocation1 [shape = 'u32[144,128]{1,0:T(1,128)}', space=vmem, size = 0x12000, scoped, tag = 'internal scratch']
  %s0 = inlined_call_operand.hbm [shape: bf16[128,128], index: 0, kind: input, shape index: {}]
  %s1 = inlined_call_operand.hbm [shape: bf16[128,128], index: 1, kind: input, shape index: {}]
  %s2 = inlined_call_operand.hbm [shape: bf16[128,128], index: 2, kind: output, shape index: {}]
  %s3 = sld [smem:[#allocation0]]
  $region49: #{tpu_custom_call.1} parent=0
    _
  %s5 = ssub.s32 1, %s3
  %s6 = scalar_select 0, %s5, %s3
  $region1: #{tpu_custom_call.1} parent=0
    #allocation2 [shape = 'u8[32768]{0}', space=vmem, size = 0x8000, scoped, tag = 'input window, operand 0']
    #allocation3 [shape = 's32[2]{0}', space=sflag, size = 0x8, scoped, tag = 'scoped memory for tpu_custom_call.1']
    #allocation4 [shape = 's32[2]{0}', space=sflag, size = 0x8, scoped, tag = 'scoped memory for tpu_custom_call.1']
    #allocation5 [shape = 'u8[32768]{0}', space=vmem, size = 0x8000, scoped, tag = 'input window, operand 1, single buffered']
    #allocation6 [shape = 's32[1]{0}', space=sflag, size = 0x4, scoped, tag = 'scoped memory for tpu_custom_call.1']
    #allocation7 [shape = 'u8[32768]{0}', space=vmem, size = 0x8000, scoped, tag = 'output window, operand 0']
    %7 = vsyncpa [#allocation3], 0
    %s8 = scalar_lea.sflag [#allocation3], 1
    %9 = vsyncpa %s8, 0
    %10 = vsyncpa [#allocation6], 0
    %11 = vsyncpa [#allocation4], 0
    %s12 = scalar_lea.sflag [#allocation4], 1
    %13 = vsyncpa %s12, 0
    loop: start=0, step=1, limit=4
    $region2: #{tpu_custom_call.1} parent=1 // loop_pre_header
      _
    $region3: #{tpu_custom_call.1} parent=1 // loop_header
      %s15 = sphi 0, %s19
      %p16 = scmp.ge.s32.totalorder %s15, 4
      %s25 = sphi 0, %s27
      %s28 = sphi 0, %s25
      %s29 = sphi 0, %s28
      %s45 = sphi 0, %s29
      %s49 = sphi 0, %s49
      %s51 = sphi 0, %s49
      %s52 = sphi 0, %s51
      %s66 = sphi 0, %s52
      %s72 = sphi 0, %s74
      %s75 = sphi 0, %s72
      %s76 = sphi 0, %s75
      %s92 = sphi 0, %s76
    $region4: #{tpu_custom_call.1} parent=1 // loop_header_branch
      %18 = sbr.rel (%p16) target = $region8
    $region5: #{tpu_custom_call.1} parent=1 // loop_body
      %s20 = ssub.s32 %s15, 1
      %s21 = ssub.s32 %s15, 2
      %s22 = sadd.s32 %s15, 1
      %s23 = ssub.s32 %s15, %s22
      %p24 = scmp.eq.s32.totalorder %s23, 0
      %s26 = sadd.s32 %s25, 1
      %s27 = scalar_select %p24, %s25, %s26
      %p30 = pneg %p24
      %p31 = scmp.eq.s32.totalorder %s15, 1
      %p32 = por %p30, %p31
      %p33 = scmp.ne.s32.totalorder %s25, %s28
      %p34 = scmp.eq.s32.totalorder %s15, 0
      %p35 = por %p33, %p34
      %p36 = scmp.ne.s32.totalorder %s25, %s28
      %p37 = scmp.eq.s32.totalorder %s20, 1
      %p38 = por %p36, %p37
      %p39 = scmp.ne.s32.totalorder %s28, %s29
      %p40 = scmp.eq.s32.totalorder %s20, 0
      %p41 = por %p39, %p40
      %p42 = scmp.ne.s32.totalorder %s28, %s29
      %p43 = scmp.eq.s32.totalorder %s21, 1
      %p44 = por %p42, %p43
      %p46 = scmp.ne.s32.totalorder %s29, %s45
      %p47 = scmp.eq.s32.totalorder %s21, 0
      %p48 = por %p46, %p47
      %s50 = sadd.s32 %s49, 1
      %p53 = scmp.eq.s32.totalorder %s15, 1
      %p54 = scmp.ne.s32.totalorder %s49, %s51
      %p55 = scmp.eq.s32.totalorder %s15, 0
      %p56 = por %p54, %p55
      %p57 = scmp.ne.s32.totalorder %s49, %s51
      %p58 = scmp.eq.s32.totalorder %s20, 1
      %p59 = por %p57, %p58
      %p60 = scmp.ne.s32.totalorder %s51, %s52
      %p61 = scmp.eq.s32.totalorder %s20, 0
      %p62 = por %p60, %p61
      %p63 = scmp.ne.s32.totalorder %s51, %s52
      %p64 = scmp.eq.s32.totalorder %s21, 1
      %p65 = por %p63, %p64
      %p67 = scmp.ne.s32.totalorder %s52, %s66
      %p68 = scmp.eq.s32.totalorder %s21, 0
      %p69 = por %p67, %p68
      %s70 = ssub.s32 %s15, %s22
      %p71 = scmp.eq.s32.totalorder %s70, 0
      %s73 = sadd.s32 %s72, 1
      %s74 = scalar_select %p71, %s72, %s73
      %p77 = pneg %p71
      %p78 = scmp.eq.s32.totalorder %s15, 1
      %p79 = por %p77, %p78
      %p80 = scmp.ne.s32.totalorder %s72, %s75
      %p81 = scmp.eq.s32.totalorder %s15, 0
      %p82 = por %p80, %p81
      %p83 = scmp.ne.s32.totalorder %s72, %s75
      %p84 = scmp.eq.s32.totalorder %s20, 1
      %p85 = por %p83, %p84
      %p86 = scmp.ne.s32.totalorder %s75, %s76
      %p87 = scmp.eq.s32.totalorder %s20, 0
      %p88 = por %p86, %p87
      %p89 = scmp.ne.s32.totalorder %s75, %s76
      %p90 = scmp.eq.s32.totalorder %s21, 1
      %p91 = por %p89, %p90
      %p93 = scmp.ne.s32.totalorder %s76, %s92
      %p94 = scmp.eq.s32.totalorder %s21, 0
      %p95 = por %p93, %p94
      %p96 = scmp.le.s32.totalorder 1, %s15
      %p97 = scmp.lt.s32.totalorder %s15, 3
      %p98 = pnand %p96, %p97
      %p99 = pneg %p98
      // Predicated region
      $region9: #{tpu_custom_call.1} parent=5 // pred_check
        _
      $region10: #{tpu_custom_call.1} parent=5 // pred_check_branch
        %101 = sbr.rel (%p98) target = $region12
      $region11: #{tpu_custom_call.1} parent=5 // pred_region
        %s102 = ssub.s32 %s15, 1
        // Predicated region
        $region13: #{tpu_custom_call.1} parent=11 // pred_check
          %p103 = pneg %p62
        $region14: #{tpu_custom_call.1} parent=11 // pred_check_branch
          %105 = sbr.rel (%p103) target = $region16
        $region15: #{tpu_custom_call.1} parent=11 // pred_region
          %s107 = ssub.s32 1024, 1024
          %108 = vsyncadd [#allocation6], %s107
          %s109 = sshll.u32 [#allocation5], 4
          %s110 = int_to_ptr.vmem [resolvable:$true] %s109
          %115 = dma.hbm_to_vmem [thread:$0]  %s1, 1024, %s110, [#allocation6], 64, 64, 4
        $region16: #{tpu_custom_call.1} parent=11 // pred_fallthru
          _
      $region12: #{tpu_custom_call.1} parent=5 // pred_fallthru
        _
      %p116 = scmp.lt.s32.totalorder %s15, 2
      // Predicated region
      $region17: #{tpu_custom_call.1} parent=5 // pred_check
        %p117 = pneg %p116
      $region18: #{tpu_custom_call.1} parent=5 // pred_check_branch
        %119 = sbr.rel (%p117) target = $region20
      $region19: #{tpu_custom_call.1} parent=5 // pred_region
        // Predicated region
        $region21: #{tpu_custom_call.1} parent=19 // pred_check
          %p120 = pneg %p35
        $region22: #{tpu_custom_call.1} parent=19 // pred_check_branch
          %122 = sbr.rel (%p120) target = $region24
        $region23: #{tpu_custom_call.1} parent=19 // pred_region
          %s123 = sand.u32 %s25, 1
          %s124 = scalar_lea.sflag [#allocation3], %s123
          %s125 = sand.u32 %s25, 1
          %s126 = smul.addr %s125, 32
          %s127 = scalar_lea.vmem [#allocation2], %s126
          %s128 = smul.u32 8, %s15
          %s130 = ssub.s32 512, 512
          %131 = vsyncadd %s124, %s130
          %s132 = smul.addr %s128, 64
          %s133 = scalar_lea.hbm %s0, %s132
          %s134 = sshll.u32 %s127, 4
          %s135 = int_to_ptr.vmem [resolvable:$true] %s134
          %140 = dma.hbm_to_vmem [thread:$0]  %s133, 512, %s135, %s124, 64, 64, 4
        $region24: #{tpu_custom_call.1} parent=19 // pred_fallthru
          _
      $region20: #{tpu_custom_call.1} parent=5 // pred_fallthru
        _
      %p141 = scmp.le.s32.totalorder 1, %s15
      %p142 = scmp.lt.s32.totalorder %s15, 3
      %p143 = pnand %p141, %p142
      %p144 = pneg %p143
      // Predicated region
      $region25: #{tpu_custom_call.1} parent=5 // pred_check
        _
      $region26: #{tpu_custom_call.1} parent=5 // pred_check_branch
        %146 = sbr.rel (%p143) target = $region28
      $region27: #{tpu_custom_call.1} parent=5 // pred_region
        %s147 = ssub.s32 %s15, 1
        %s148 = sand.u32 %s28, 1
        %s149 = scalar_lea.sflag [#allocation3], %s148
        %s150 = sand.u32 %s28, 1
        %s151 = smul.addr %s150, 32
        %s152 = scalar_lea.vmem [#allocation2], %s151
        // Predicated region
        $region29: #{tpu_custom_call.1} parent=27 // pred_check
          %p153 = pneg %p41
        $region30: #{tpu_custom_call.1} parent=27 // pred_check_branch
          %155 = sbr.rel (%p153) target = $region32
        $region31: #{tpu_custom_call.1} parent=27 // pred_region
          %156 = dma.done %s149, 512
        $region32: #{tpu_custom_call.1} parent=27 // pred_fallthru
          _
        // Predicated region
        $region33: #{tpu_custom_call.1} parent=27 // pred_check
          %p157 = pneg %p62
        $region34: #{tpu_custom_call.1} parent=27 // pred_check_branch
          %159 = sbr.rel (%p157) target = $region36
        $region35: #{tpu_custom_call.1} parent=27 // pred_region
          %160 = dma.done [#allocation6], 1024
        $region36: #{tpu_custom_call.1} parent=27 // pred_fallthru
          _
        %s161 = sand.u32 %s28, 1
        %s162 = scalar_lea.sflag [#allocation3], %s161
        %s163 = sand.u32 %s28, 1
        %s164 = smul.addr %s163, 32
        %s165 = scalar_lea.vmem [#allocation2], %s164
        %p166 = pneg %p41
        %p167 = pneg %p38
        %p168 = pneg %p62
        %p169 = pneg %p59
        %p170 = pneg %p88
        %p171 = pneg %p85
        %s172 = sand.u32 %s75, 1
        %s173 = scalar_lea.sflag [#allocation4], %s172
        %s174 = sand.u32 %s75, 1
        %s175 = smul.addr %s174, 32
        %s176 = scalar_lea.vmem [#allocation7], %s175
        %s177 = smul.u32 8, %s20
        %s178 = smul.u32 8, %s20
        %v180 = vld [vmem:[%s152] sm:$0xf]
        %v181 = vld [vmem:[%s152 + $0x4] sm:$0xf]
        %v182 = vld [vmem:[%s152 + $0x8] sm:$0xf]
        %v183 = vld [vmem:[%s152 + $0xc] sm:$0xf]
        %v184 = vld [vmem:[%s152 + $0x10] sm:$0xf]
        %v185 = vld [vmem:[%s152 + $0x14] sm:$0xf]
        %v186 = vld [vmem:[%s152 + $0x18] sm:$0xf]
        %v187 = vld [vmem:[%s152 + $0x1c] sm:$0xf]
        %v188 = vld [vmem:[#allocation5] sm:$0xf]
        %v189 = vld [vmem:[#allocation5 + $0x4] sm:$0xf]
        %v190 = vld [vmem:[#allocation5 + $0x8] sm:$0xf]
        %v191 = vld [vmem:[#allocation5 + $0xc] sm:$0xf]
        %v192 = vld [vmem:[#allocation5 + $0x10] sm:$0xf]
        %v193 = vld [vmem:[#allocation5 + $0x14] sm:$0xf]
        %v194 = vld [vmem:[#allocation5 + $0x18] sm:$0xf]
        %v195 = vld [vmem:[#allocation5 + $0x1c] sm:$0xf]
        %v196 = vld [vmem:[#allocation5 + $0x20] sm:$0xf]
        %v197 = vld [vmem:[#allocation5 + $0x24] sm:$0xf]
        %v198 = vld [vmem:[#allocation5 + $0x28] sm:$0xf]
        %v199 = vld [vmem:[#allocation5 + $0x2c] sm:$0xf]
        %v200 = vld [vmem:[#allocation5 + $0x30] sm:$0xf]
        %v201 = vld [vmem:[#allocation5 + $0x34] sm:$0xf]
        %v202 = vld [vmem:[#allocation5 + $0x38] sm:$0xf]
        %v203 = vld [vmem:[#allocation5 + $0x3c] sm:$0xf]
        %v212 = vunpack.c.l.b16 %v180
        %v213 = vunpack.c.l.b16 %v181
        %v214 = vunpack.c.l.b16 %v182
        %v215 = vunpack.c.l.b16 %v183
        %v216 = vunpack.c.l.b16 %v184
        %v217 = vunpack.c.l.b16 %v185
        %v218 = vunpack.c.l.b16 %v186
        %v219 = vunpack.c.l.b16 %v187
        %v220 = vpack.c.b16 %v213, %v212
        %v221 = vpack.c.b16 %v215, %v214
        %v222 = vpack.c.b16 %v217, %v216
        %v223 = vpack.c.b16 %v219, %v218
        %v244 = vunpack.c.l.b16 %v188
        %v245 = vunpack.c.l.b16 %v189
        %v246 = vunpack.c.l.b16 %v190
        %v247 = vunpack.c.l.b16 %v191
        %v248 = vunpack.c.l.b16 %v192
        %v249 = vunpack.c.l.b16 %v193
        %v250 = vunpack.c.l.b16 %v194
        %v251 = vunpack.c.l.b16 %v195
        %v252 = vunpack.c.l.b16 %v196
        %v253 = vunpack.c.l.b16 %v197
        %v254 = vunpack.c.l.b16 %v198
        %v255 = vunpack.c.l.b16 %v199
        %v256 = vunpack.c.l.b16 %v200
        %v257 = vunpack.c.l.b16 %v201
        %v258 = vunpack.c.l.b16 %v202
        %v259 = vunpack.c.l.b16 %v203
        %v260 = vpack.c.b16 %v245, %v244
        %v261 = vpack.c.b16 %v247, %v246
        %v262 = vpack.c.b16 %v249, %v248
        %v263 = vpack.c.b16 %v251, %v250
        %v264 = vpack.c.b16 %v253, %v252
        %v265 = vpack.c.b16 %v255, %v254
        %v266 = vpack.c.b16 %v257, %v256
        %v267 = vpack.c.b16 %v259, %v258
        %276 = vmatprep.subr.bf16.mxu0 0
        %277 = vmatpush1.bf16.msra.mxu0 %v260
        %278 = vmatprep.subr.bf16.mxu0 0
        %279 = vmatpush1.bf16.msra.mxu0 %v261
        %280 = vmatprep.subr.bf16.mxu0 0
        %281 = vmatpush1.bf16.msra.mxu0 %v262
        %282 = vmatprep.subr.bf16.mxu0 0
        %283 = vmatpush1.bf16.msra.mxu0 %v263
        %284 = vmatprep.subr.bf16.mxu0 0
        %285 = vmatpush1.bf16.msra.mxu0 %v264
        %286 = vmatprep.subr.bf16.mxu0 0
        %287 = vmatpush1.bf16.msra.mxu0 %v265
        %288 = vmatprep.subr.bf16.mxu0 0
        %289 = vmatpush1.bf16.msra.mxu0 %v266
        %290 = vmatprep.subr.bf16.mxu0 0
        %291 = vmatpush1.bf16.msra.mxu0 %v267
        %292 = vmatprep.subr.bf16.mxu0 0
        %293 = vmatpush1.bf16.msra.mxu0 0
        %294 = vmatprep.subr.bf16.mxu0 0
        %295 = vmatpush1.bf16.msra.mxu0 0
        %296 = vmatprep.subr.bf16.mxu0 0
        %297 = vmatpush1.bf16.msra.mxu0 0
        %298 = vmatprep.subr.bf16.mxu0 0
        %299 = vmatpush1.bf16.msra.mxu0 0
        %300 = vmatprep.subr.bf16.mxu0 0
        %301 = vmatpush1.bf16.msra.mxu0 0
        %302 = vmatprep.subr.bf16.mxu0 0
        %303 = vmatpush1.bf16.msra.mxu0 0
        %304 = vmatprep.subr.bf16.mxu0 0
        %305 = vmatpush1.bf16.msra.mxu0 0
        %306 = vmatprep.subr.bf16.mxu0 0
        %307 = vmatpush1.bf16.msra.mxu0 0
        %308 = vmatprep.mubr.bf16.mxu0 0
        %309 = vmatmul.mubr.bf16.gmra.mrb[0].mxu0 %v220
        %v310 = vpop.f32.mrb[0].mxu0
        %v311 = vadd.f32 0.0, %v310
        %v312 = vpop.f32.mrb[0].mxu0
        %v313 = vpop.f32.mrb[0].mxu0
        %v314 = vadd.f32 0.0, %v313
        %v315 = vpop.f32.mrb[0].mxu0
        %316 = vmatprep.mubr.bf16.mxu0 0
        %317 = vmatmul.mubr.bf16.gmra.mrb[0].mxu0 %v221
        %v318 = vpop.f32.mrb[0].mxu0
        %v319 = vadd.f32 0.0, %v318
        %v320 = vpop.f32.mrb[0].mxu0
        %v321 = vpop.f32.mrb[0].mxu0
        %v322 = vadd.f32 0.0, %v321
        %v323 = vpop.f32.mrb[0].mxu0
        %324 = vmatprep.mubr.bf16.mxu0 0
        %325 = vmatmul.mubr.bf16.gmra.mrb[0].mxu0 %v222
        %v326 = vpop.f32.mrb[0].mxu0
        %v327 = vadd.f32 0.0, %v326
        %v328 = vpop.f32.mrb[0].mxu0
        %v329 = vpop.f32.mrb[0].mxu0
        %v330 = vadd.f32 0.0, %v329
        %v331 = vpop.f32.mrb[0].mxu0
        %332 = vmatprep.mubr.bf16.mxu0 0
        %333 = vmatmul.mubr.bf16.gmra.mrb[0].mxu0 %v223
        %v334 = vpop.f32.mrb[0].mxu0
        %v335 = vadd.f32 0.0, %v334
        %v336 = vpop.f32.mrb[0].mxu0
        %v337 = vpop.f32.mrb[0].mxu0
        %v338 = vadd.f32 0.0, %v337
        %v339 = vpop.f32.mrb[0].mxu0
        %340 = vdwg.mxu0
        %v341 = vpack.c.bf16 %v314, %v311
        %v342 = vpack.c.bf16 %v322, %v319
        %v343 = vpack.c.bf16 %v330, %v327
        %v344 = vpack.c.bf16 %v338, %v335
        %v349 = vunpack.c.l.b16 %v341
        %v350 = vunpack.c.h.b16 %v341
        %v351 = vunpack.c.l.b16 %v342
        %v352 = vunpack.c.h.b16 %v342
        %v353 = vunpack.c.l.b16 %v343
        %v354 = vunpack.c.h.b16 %v343
        %v355 = vunpack.c.l.b16 %v344
        %v356 = vunpack.c.h.b16 %v344
        %v357 = vpack.c.b16 %v349, %v349
        %v358 = vpack.c.b16 %v350, %v350
        %v359 = vpack.c.b16 %v351, %v351
        %v360 = vpack.c.b16 %v352, %v352
        %v361 = vpack.c.b16 %v353, %v353
        %v362 = vpack.c.b16 %v354, %v354
        %v363 = vpack.c.b16 %v355, %v355
        %v364 = vpack.c.b16 %v356, %v356
        %373 = vst [vmem:[%s176] sm:$0xf] %v357
        %374 = vst [vmem:[%s176 + $0x4] sm:$0xf] %v358
        %375 = vst [vmem:[%s176 + $0x8] sm:$0xf] %v359
        %376 = vst [vmem:[%s176 + $0xc] sm:$0xf] %v360
        %377 = vst [vmem:[%s176 + $0x10] sm:$0xf] %v361
        %378 = vst [vmem:[%s176 + $0x14] sm:$0xf] %v362
        %379 = vst [vmem:[%s176 + $0x18] sm:$0xf] %v363
        %380 = vst [vmem:[%s176 + $0x1c] sm:$0xf] %v364
        %s381 = sand.u32 %s75, 1
        %s382 = scalar_lea.sflag [#allocation4], %s381
        %s383 = sand.u32 %s75, 1
        %s384 = smul.addr %s383, 32
        %s385 = scalar_lea.vmem [#allocation7], %s384
        // Predicated region
        $region37: #{tpu_custom_call.1} parent=27 // pred_check
          %p386 = pneg %p85
        $region38: #{tpu_custom_call.1} parent=27 // pred_check_branch
          %388 = sbr.rel (%p386) target = $region40
        $region39: #{tpu_custom_call.1} parent=27 // pred_region
          %s389 = smul.u32 8, %s20
          %s391 = ssub.s32 512, 512
          %392 = vsyncadd %s382, %s391
          %s393 = smul.addr %s389, 64
          %s394 = scalar_lea.hbm %s2, %s393
          %s395 = sshll.u32 %s385, 4
          %s396 = int_to_ptr.vmem [resolvable:$true] %s395
          %401 = dma.vmem_to_hbm [thread:$0]  %s396, 512, %s394, %s382, 64, 64, 4
        $region40: #{tpu_custom_call.1} parent=27 // pred_fallthru
          _
      $region28: #{tpu_custom_call.1} parent=5 // pred_fallthru
        _
      %p402 = scmp.le.s32.totalorder 2, %s15
      // Predicated region
      $region41: #{tpu_custom_call.1} parent=5 // pred_check
        %p403 = pneg %p402
      $region42: #{tpu_custom_call.1} parent=5 // pred_check_branch
        %405 = sbr.rel (%p403) target = $region44
      $region43: #{tpu_custom_call.1} parent=5 // pred_region
        %s406 = ssub.s32 %s15, 2
        // Predicated region
        $region45: #{tpu_custom_call.1} parent=43 // pred_check
          %p407 = pneg %p91
        $region46: #{tpu_custom_call.1} parent=43 // pred_check_branch
          %409 = sbr.rel (%p407) target = $region48
        $region47: #{tpu_custom_call.1} parent=43 // pred_region
          %s410 = sand.u32 %s76, 1
          %s411 = scalar_lea.sflag [#allocation4], %s410
          %s412 = sand.u32 %s76, 1
          %s413 = smul.addr %s412, 32
          %s414 = scalar_lea.vmem [#allocation7], %s413
          %415 = dma.done %s411, 512
        $region48: #{tpu_custom_call.1} parent=43 // pred_fallthru
          _
      $region44: #{tpu_custom_call.1} parent=5 // pred_fallthru
        _
    $region6: #{tpu_custom_call.1} parent=1 // loop_footer
      %s19 = sadd.s32 1, %s15
    $region7: #{tpu_custom_call.1} parent=1 // loop_footer_branch
      %14 = sbr.rel target = $region3
    $region8: #{tpu_custom_call.1} parent=1 // loop_exit
      _
    %416 = vsyncpa [#allocation3], 1
    %s417 = scalar_lea.sflag [#allocation3], 1
    %418 = vsyncpa %s417, 1
    %419 = vsyncpa [#allocation6], 1
    %420 = vsyncpa [#allocation4], 1
    %s421 = scalar_lea.sflag [#allocation4], 1
    %422 = vsyncpa %s421, 1

</llo_original>
